<compile_context>
chip_gen: v7x
topology: tpu7x:2x2x1
jax: 0.10.0
libtpu: 0.0.40
codegen_flags: <defaults>
</compile_context>

<pallas_src>
import math

import jax
import jax.numpy as jnp
import numpy as np
from jax.experimental import pallas as pl
from jax.experimental.pallas import tpu as pltpu

_HALF_LOG_2PI = 0.5 * math.log(2.0 * math.pi)


def _radial_logprob_kernel(x_ref, loc_ref, a2_ref, c_ref, o_ref):
    # x block:      (1, tm, tn)  in x.dtype
    # param blocks: (tm, tn)     f32, broadcast against x in-register (VPU).
    x = x_ref[...].astype(jnp.float32)
    d = x - loc_ref[...]
    o_ref[...] = (d * d * a2_ref[...] + c_ref[...]).astype(o_ref.dtype)


def _pick_tile(dim, target, align):
    """Full dim if it fits the target, else the largest aligned tile <= target."""
    if dim <= target:
        return int(dim)
    return int(max(align, (target // align) * align))


def radial_log_prob(x, loc, softplus_scale, *, row_tile=512, col_tile=2048):
    """Element-wise Radial (Normal-reduced) log_prob via a tiled Pallas kernel.

    x may carry leading sample/batch dims: x.shape == (*batch, *param_shape).
    Parameters are never broadcast in HBM; broadcasting happens in-kernel.
    All parameter-only transcendentals are hoisted to a one-time (R, C)
    precompute so the kernel itself is pure HBM-bandwidth streaming.
    """
    param_shape = loc.shape
    assert softplus_scale.shape == param_shape
    assert len(param_shape) >= 1
    nb = x.ndim - len(param_shape)
    assert nb >= 0 and x.shape[nb:] == param_shape, "x must end with the param shape"

    batch_shape = x.shape[:nb]
    B = int(np.prod(batch_shape)) if nb else 1
    C = int(param_shape[-1])
    R = int(np.prod(param_shape[:-1])) if len(param_shape) > 1 else 1

    x3 = x.reshape(B, R, C)
    loc2 = loc.reshape(R, C).astype(jnp.float32)
    sps2 = softplus_scale.reshape(R, C).astype(jnp.float32)

    # Hoisted parameter-only math: done ONCE on (R, C), not per element.
    scale = jnp.logaddexp(sps2, 0.0)                  # softplus, numerically stable
    a2 = -0.5 / (scale * scale)                       # exact quadratic coefficient
    c = -(jnp.log(scale) + _HALF_LOG_2PI)             # exact constant term

    # Large, lane-dense tiles (multiples of (8,128) or the full dim).
    tm = _pick_tile(R, row_tile, 8)
    tn = _pick_tile(C, col_tile, 128)
    # b innermost: param tiles keep the same block index so they are not
    # re-DMA'd across samples.
    grid = (pl.cdiv(R, tm), pl.cdiv(C, tn), B)

    x_spec = pl.BlockSpec((1, tm, tn), lambda i, j, b: (b, i, j))
    p_map = lambda i, j, b: (i, j)  # batch-invariant

    out_dtype = x.dtype
    total = B * R * C
    cost = pl.CostEstimate(
        flops=3 * total,                                   # sub, mul, fma per element
        transcendentals=0,                                 # all hoisted to the wrapper
        bytes_accessed=(total * x.dtype.itemsize           # read x
                        + 3 * R * C * 4                    # read loc/a2/c once (f32)
                        + total * jnp.dtype(out_dtype).itemsize),  # write out
    )

    def _call(single_buffer_params):
        if single_buffer_params:
            # Params never change along the inner b axis; double-buffering them
            # only wastes VMEM needed for the large x/out tiles.
            p_spec = pl.BlockSpec((tm, tn), p_map, pipeline_mode=pl.Buffered(1))
        else:
            p_spec = pl.BlockSpec((tm, tn), p_map)
        return pl.pallas_call(
            _radial_logprob_kernel,
            out_shape=jax.ShapeDtypeStruct((B, R, C), out_dtype),
            grid_spec=pltpu.PrefetchScalarGridSpec(
                num_scalar_prefetch=0,
                grid=grid,
                in_specs=[x_spec, p_spec, p_spec, p_spec],
                out_specs=x_spec,
            ),
            compiler_params=pltpu.CompilerParams(
                dimension_semantics=("parallel", "parallel", "parallel"),
                vmem_limit_bytes=48 * 1024 * 1024,   # safe on v5e/v6e (128 MiB) and v7x (64 MiB)
            ),
            cost_estimate=cost,
        )(x3, loc2, a2, c)

    try:
        out3 = _call(True)
    except Exception:
        # Fallback: default double-buffered params (still fits the 48 MiB budget).
        out3 = _call(False)
    return out3.reshape(x.shape)


class RadialPallas:
    """JAX-side stand-in for the PyTorch `Radial` module (forward only)."""

    def __init__(self, shape, divergence_estimation_samples=10):
        if not hasattr(shape, "__len__"):
            shape = (shape,)
        self.shape = tuple(shape)
        self.divergence_estimation_samples = divergence_estimation_samples
        self.standard_init()

    def standard_init(self):
        # Matches torch: loc = 0, softplus_scale = log(e - 1)  => scale = 1.
        self.loc = jnp.zeros(self.shape, dtype=jnp.float32)
        self.softplus_scale = jnp.full(
            self.shape, math.log(math.e - 1.0), dtype=jnp.float32)

    def __call__(self, x):
        return radial_log_prob(x, self.loc, self.softplus_scale)


if __name__ == "__main__":
    # Weight-matrix Radial posterior: shape [fan_out, fan_in], 4 MC samples of x.
    shape = (16, 256)
    num_samples = 4

    module = RadialPallas(shape)

    key = jax.random.PRNGKey(0)
    x = jax.random.normal(key, (num_samples,) + shape, dtype=jnp.float32)

    out = jax.block_until_ready(module(x))

    # Plain-JAX reference of the same formula (exact math now -> tight tol).
    scale = jnp.logaddexp(module.softplus_scale, 0.0)
    ref = (-((x - module.loc) ** 2) / (2.0 * scale * scale)
           - jnp.log(scale) - _HALF_LOG_2PI)
    assert out.shape == x.shape
    assert out.dtype == x.dtype
    assert bool(jnp.allclose(out, ref, rtol=1e-5, atol=1e-5)), (
        float(jnp.max(jnp.abs(out - ref))))

    # bf16 I/O path: post-hoist the kernel is pure HBM bandwidth, so bf16
    # halves the bytes moved. Compute stays f32 in-register.
    xb = x.astype(jnp.bfloat16)
    outb = jax.block_until_ready(module(xb))
    refb = (-((xb.astype(jnp.float32) - module.loc) ** 2) / (2.0 * scale * scale)
            - jnp.log(scale) - _HALF_LOG_2PI)
    assert outb.dtype == jnp.bfloat16
    assert bool(jnp.allclose(outb.astype(jnp.float32), refb, rtol=3e-2, atol=3e-2)), (
        float(jnp.max(jnp.abs(outb.astype(jnp.float32) - refb))))

    print("KERNEL_OK")
</pallas_src>

<mosaic_0001>
module attributes {stable_mosaic.version = 11 : i64} {
  func.func @_radial_logprob_kernel(%arg0: i32, %arg1: i32, %arg2: i32, %arg3: memref<1x16x256xf32, #tpu.memory_space<vmem>>, %arg4: memref<16x256xf32, #tpu.memory_space<vmem>>, %arg5: memref<16x256xf32, #tpu.memory_space<vmem>>, %arg6: memref<16x256xf32, #tpu.memory_space<vmem>>, %arg7: memref<1x16x256xf32, #tpu.memory_space<vmem>>) attributes {dimension_semantics = [#tpu.dimension_semantics<parallel>, #tpu.dimension_semantics<parallel>, #tpu.dimension_semantics<parallel>], iteration_bounds = array<i64: 1, 1, 4>, scalar_prefetch = 0 : i64, scratch_operands = 0 : i64, tpu.core_type = #tpu.core_type<tc>, window_params = [{transform_indices = @transform_0, window_bounds = array<i64: 1, 16, 256>}, {pipeline_mode = #tpu.pipeline_mode<synchronous>, transform_indices = @transform_1, window_bounds = array<i64: 16, 256>}, {pipeline_mode = #tpu.pipeline_mode<synchronous>, transform_indices = @transform_2, window_bounds = array<i64: 16, 256>}, {pipeline_mode = #tpu.pipeline_mode<synchronous>, transform_indices = @transform_3, window_bounds = array<i64: 16, 256>}, {transform_indices = @transform_4, window_bounds = array<i64: 1, 16, 256>}]} {
    %c0 = arith.constant 0 : index
    %c0_0 = arith.constant 0 : index
    %c0_1 = arith.constant 0 : index
    %0 = vector.load %arg3[%c0, %c0_0, %c0_1] : memref<1x16x256xf32, #tpu.memory_space<vmem>>, vector<1x16x256xf32>
    %c0_2 = arith.constant 0 : index
    %c0_3 = arith.constant 0 : index
    %1 = vector.load %arg4[%c0_2, %c0_3] : memref<16x256xf32, #tpu.memory_space<vmem>>, vector<16x256xf32>
    %2 = vector.shape_cast %1 : vector<16x256xf32> to vector<1x16x256xf32>
    %3 = arith.subf %0, %2 : vector<1x16x256xf32>
    %4 = arith.mulf %3, %3 : vector<1x16x256xf32>
    %c0_4 = arith.constant 0 : index
    %c0_5 = arith.constant 0 : index
    %5 = vector.load %arg5[%c0_4, %c0_5] : memref<16x256xf32, #tpu.memory_space<vmem>>, vector<16x256xf32>
    %6 = vector.shape_cast %5 : vector<16x256xf32> to vector<1x16x256xf32>
    %7 = arith.mulf %4, %6 : vector<1x16x256xf32>
    %c0_6 = arith.constant 0 : index
    %c0_7 = arith.constant 0 : index
    %8 = vector.load %arg6[%c0_6, %c0_7] : memref<16x256xf32, #tpu.memory_space<vmem>>, vector<16x256xf32>
    %9 = vector.shape_cast %8 : vector<16x256xf32> to vector<1x16x256xf32>
    %10 = arith.addf %7, %9 : vector<1x16x256xf32>
    %c0_8 = arith.constant 0 : index
    %c0_9 = arith.constant 0 : index
    %c0_10 = arith.constant 0 : index
    %11 = vector.load %arg7[%c0_8, %c0_9, %c0_10] : memref<1x16x256xf32, #tpu.memory_space<vmem>>, vector<1x16x256xf32>
    tpu.vector_store %arg7[%c0_8, %c0_9, %c0_10], %10 {strides = array<i32>} : memref<1x16x256xf32, #tpu.memory_space<vmem>>, vector<1x16x256xf32>,
    return
  }
  func.func @transform_0(%arg0: i32, %arg1: i32, %arg2: i32) -> (i32, i32, i32) {
    %c0_i32 = arith.constant 0 : i32
    return %arg2, %arg0, %arg1 : i32, i32, i32
  }
  func.func @transform_1(%arg0: i32, %arg1: i32, %arg2: i32) -> (i32, i32) {
    %c0_i32 = arith.constant 0 : i32
    return %arg0, %arg1 : i32, i32
  }
  func.func @transform_2(%arg0: i32, %arg1: i32, %arg2: i32) -> (i32, i32) {
    %c0_i32 = arith.constant 0 : i32
    return %arg0, %arg1 : i32, i32
  }
  func.func @transform_3(%arg0: i32, %arg1: i32, %arg2: i32) -> (i32, i32) {
    %c0_i32 = arith.constant 0 : i32
    return %arg0, %arg1 : i32, i32
  }
  func.func @transform_4(%arg0: i32, %arg1: i32, %arg2: i32) -> (i32, i32, i32) {
    %c0_i32 = arith.constant 0 : i32
    return %arg2, %arg0, %arg1 : i32, i32, i32
  }
}

module attributes {stable_mosaic.version = 11 : i64} {
  func.func @_radial_logprob_kernel(%arg0: i32, %arg1: i32, %arg2: i32, %arg3: memref<1x16x256xf32, #tpu.memory_space<vmem>>, %arg4: memref<16x256xf32, #tpu.memory_space<vmem>>, %arg5: memref<16x256xf32, #tpu.memory_space<vmem>>, %arg6: memref<16x256xf32, #tpu.memory_space<vmem>>, %arg7: memref<1x16x256xf32, #tpu.memory_space<vmem>>) attributes {dimension_semantics = [#tpu.dimension_semantics<parallel>, #tpu.dimension_semantics<parallel>, #tpu.dimension_semantics<parallel>], iteration_bounds = array<i64: 1, 1, 4>, scalar_prefetch = 0 : i64, scratch_operands = 0 : i64, tpu.core_type = #tpu.core_type<tc>, window_params = [{transform_indices = @transform_0, window_bounds = array<i64: 1, 16, 256>}, {transform_indices = @transform_1, window_bounds = array<i64: 16, 256>}, {transform_indices = @transform_2, window_bounds = array<i64: 16, 256>}, {transform_indices = @transform_3, window_bounds = array<i64: 16, 256>}, {transform_indices = @transform_4, window_bounds = array<i64: 1, 16, 256>}]} {
    %c0 = arith.constant 0 : index
    %c0_0 = arith.constant 0 : index
    %c0_1 = arith.constant 0 : index
    %0 = vector.load %arg3[%c0, %c0_0, %c0_1] : memref<1x16x256xf32, #tpu.memory_space<vmem>>, vector<1x16x256xf32>
    %c0_2 = arith.constant 0 : index
    %c0_3 = arith.constant 0 : index
    %1 = vector.load %arg4[%c0_2, %c0_3] : memref<16x256xf32, #tpu.memory_space<vmem>>, vector<16x256xf32>
    %2 = vector.shape_cast %1 : vector<16x256xf32> to vector<1x16x256xf32>
    %3 = arith.subf %0, %2 : vector<1x16x256xf32>
    %4 = arith.mulf %3, %3 : vector<1x16x256xf32>
    %c0_4 = arith.constant 0 : index
    %c0_5 = arith.constant 0 : index
    %5 = vector.load %arg5[%c0_4, %c0_5] : memref<16x256xf32, #tpu.memory_space<vmem>>, vector<16x256xf32>
    %6 = vector.shape_cast %5 : vector<16x256xf32> to vector<1x16x256xf32>
    %7 = arith.mulf %4, %6 : vector<1x16x256xf32>
    %c0_6 = arith.constant 0 : index
    %c0_7 = arith.constant 0 : index
    %8 = vector.load %arg6[%c0_6, %c0_7] : memref<16x256xf32, #tpu.memory_space<vmem>>, vector<16x256xf32>
    %9 = vector.shape_cast %8 : vector<16x256xf32> to vector<1x16x256xf32>
    %10 = arith.addf %7, %9 : vector<1x16x256xf32>
    %c0_8 = arith.constant 0 : index
    %c0_9 = arith.constant 0 : index
    %c0_10 = arith.constant 0 : index
    %11 = vector.load %arg7[%c0_8, %c0_9, %c0_10] : memref<1x16x256xf32, #tpu.memory_space<vmem>>, vector<1x16x256xf32>
    tpu.vector_store %arg7[%c0_8, %c0_9, %c0_10], %10 {strides = array<i32>} : memref<1x16x256xf32, #tpu.memory_space<vmem>>, vector<1x16x256xf32>,
    return
  }
  func.func @transform_0(%arg0: i32, %arg1: i32, %arg2: i32) -> (i32, i32, i32) {
    %c0_i32 = arith.constant 0 : i32
    return %arg2, %arg0, %arg1 : i32, i32, i32
  }
  func.func @transform_1(%arg0: i32, %arg1: i32, %arg2: i32) -> (i32, i32) {
    %c0_i32 = arith.constant 0 : i32
    return %arg0, %arg1 : i32, i32
  }
  func.func @transform_2(%arg0: i32, %arg1: i32, %arg2: i32) -> (i32, i32) {
    %c0_i32 = arith.constant 0 : i32
    return %arg0, %arg1 : i32, i32
  }
  func.func @transform_3(%arg0: i32, %arg1: i32, %arg2: i32) -> (i32, i32) {
    %c0_i32 = arith.constant 0 : i32
    return %arg0, %arg1 : i32, i32
  }
  func.func @transform_4(%arg0: i32, %arg1: i32, %arg2: i32) -> (i32, i32, i32) {
    %c0_i32 = arith.constant 0 : i32
    return %arg2, %arg0, %arg1 : i32, i32, i32
  }
}

</mosaic_0001>

<llo_original>
// kernel: tpu_custom_call.1
$region0: #{tpu_custom_call.1}
  #allocation0 [shape = 'u32[]', space=smem, size = 0x4, offset = 0x4, fixed_abs, tag = 'smem constant byte address 0x4 - core index']
  #allocation1 [shape = 'u32[144,128]{1,0:T(1,128)}', space=vmem, size = 0x12000, scoped, tag = 'internal scratch']
  %s0 = inlined_call_operand.hbm [shape: f32[4,16,256], index: 0, kind: input, shape index: {}]
  %s1 = inlined_call_operand.hbm [shape: f32[16,256], index: 1, kind: input, shape index: {}]
  %s2 = inlined_call_operand.hbm [shape: f32[16,256], index: 2, kind: input, shape index: {}]
  %s3 = inlined_call_operand.hbm [shape: f32[16,256], index: 3, kind: input, shape index: {}]
  %s4 = inlined_call_operand.hbm [shape: f32[4,16,256], index: 4, kind: output, shape index: {}]
  %s5 = sld [smem:[#allocation0]]
  $region65: #{tpu_custom_call.1} parent=0
    _
  %s7 = ssub.s32 1, %s5
  %s8 = scalar_select 0, %s7, %s5
  $region1: #{tpu_custom_call.1} parent=0
    #allocation2 [shape = 'u8[32768]{0}', space=vmem, size = 0x8000, scoped, tag = 'input window, operand 0']
    #allocation3 [shape = 's32[2]{0}', space=sflag, size = 0x8, scoped, tag = 'scoped memory for tpu_custom_call.1']
    #allocation4 [shape = 's32[2]{0}', space=sflag, size = 0x8, scoped, tag = 'scoped memory for tpu_custom_call.1']
    #allocation5 [shape = 'u8[16384]{0}', space=vmem, size = 0x4000, scoped, tag = 'input window, operand 1, single buffered']
    #allocation6 [shape = 's32[1]{0}', space=sflag, size = 0x4, scoped, tag = 'scoped memory for tpu_custom_call.1']
    #allocation7 [shape = 'u8[16384]{0}', space=vmem, size = 0x4000, scoped, tag = 'input window, operand 2, single buffered']
    #allocation8 [shape = 'u8[16384]{0}', space=vmem, size = 0x4000, scoped, tag = 'input window, operand 3, single buffered']
    #allocation9 [shape = 's32[1]{0}', space=sflag, size = 0x4, scoped, tag = 'scoped memory for tpu_custom_call.1']
    #allocation10 [shape = 'u8[32768]{0}', space=vmem, size = 0x8000, scoped, tag = 'output window, operand 0']
    %9 = vsyncpa [#allocation3], 0
    %s10 = scalar_lea.sflag [#allocation3], 1
    %11 = vsyncpa %s10, 0
    %12 = vsyncpa [#allocation6], 0
    %13 = vsyncpa [#allocation9], 0
    %14 = vsyncpa [#allocation4], 0
    %s15 = scalar_lea.sflag [#allocation4], 1
    %16 = vsyncpa %s15, 0
    loop: start=0, step=1, limit=6
    $region2: #{tpu_custom_call.1} parent=1 // loop_pre_header
      _
    $region3: #{tpu_custom_call.1} parent=1 // loop_header
      %s18 = sphi 0, %s22
      %p19 = scmp.ge.s32.totalorder %s18, 6
      %s25 = sphi 0, %s44
      %s26 = sphi 0, %s40
      %s27 = sphi 0, %s36
      %s28 = sphi 0, %s25
      %s29 = sphi 0, %s26
      %s30 = sphi 0, %s27
      %s31 = sphi 0, %s28
      %s32 = sphi 0, %s29
      %s33 = sphi 0, %s30
      %s51 = sphi 0, %s53
      %s54 = sphi 0, %s51
      %s55 = sphi 0, %s54
      %s71 = sphi 0, %s55
      %s79 = sphi 0, %s81
      %s82 = sphi 0, %s79
      %s83 = sphi 0, %s82
      %s99 = sphi 0, %s83
      %s107 = sphi 0, %s109
      %s110 = sphi 0, %s107
      %s111 = sphi 0, %s110
      %s127 = sphi 0, %s111
      %s135 = sphi 0, %s137
      %s138 = sphi 0, %s135
      %s139 = sphi 0, %s138
      %s155 = sphi 0, %s139
      %s165 = sphi 0, %s167
      %s168 = sphi 0, %s165
      %s169 = sphi 0, %s168
      %s185 = sphi 0, %s169
    $region4: #{tpu_custom_call.1} parent=1 // loop_header_branch
      %21 = sbr.rel (%p19) target = $region8
    $region5: #{tpu_custom_call.1} parent=1 // loop_body
      %s23 = ssub.s32 %s18, 1
      %s24 = ssub.s32 %s18, 2
      %s34 = sadd.s32 1, %s27
      %p35 = scmp.ge.s32.totalorder %s34, 4
      %s36 = scalar_select %p35, 0, %s34
      %s37 = sadd.s32 1, %s26
      %s38 = scalar_select %p35, %s37, %s26
      %p39 = scmp.ge.s32.totalorder %s38, 1
      %s40 = scalar_select %p39, 0, %s38
      %s41 = sadd.s32 1, %s25
      %s42 = scalar_select %p39, %s41, %s25
      %p43 = scmp.ge.s32.totalorder %s42, 1
      %s44 = scalar_select %p43, 0, %s42
      %s45 = ssub.s32 %s27, %s36
      %s46 = ssub.s32 %s25, %s44
      %s47 = sor.u32 %s45, %s46
      %s48 = ssub.s32 %s26, %s40
      %s49 = sor.u32 %s47, %s48
      %p50 = scmp.eq.s32.totalorder %s49, 0
      %s52 = sadd.s32 %s51, 1
      %s53 = scalar_select %p50, %s51, %s52
      %p56 = pneg %p50
      %p57 = scmp.eq.s32.totalorder %s18, 3
      %p58 = por %p56, %p57
      %p59 = scmp.ne.s32.totalorder %s51, %s54
      %p60 = scmp.eq.s32.totalorder %s18, 0
      %p61 = por %p59, %p60
      %p62 = scmp.ne.s32.totalorder %s51, %s54
      %p63 = scmp.eq.s32.totalorder %s23, 3
      %p64 = por %p62, %p63
      %p65 = scmp.ne.s32.totalorder %s54, %s55
      %p66 = scmp.eq.s32.totalorder %s23, 0
      %p67 = por %p65, %p66
      %p68 = scmp.ne.s32.totalorder %s54, %s55
      %p69 = scmp.eq.s32.totalorder %s24, 3
      %p70 = por %p68, %p69
      %p72 = scmp.ne.s32.totalorder %s55, %s71
      %p73 = scmp.eq.s32.totalorder %s24, 0
      %p74 = por %p72, %p73
      %s75 = ssub.s32 %s25, %s44
      %s76 = ssub.s32 %s26, %s40
      %s77 = sor.u32 %s75, %s76
      %p78 = scmp.eq.s32.totalorder %s77, 0
      %s80 = sadd.s32 %s79, 1
      %s81 = scalar_select %p78, %s79, %s80
      %p84 = pneg %p78
      %p85 = scmp.eq.s32.totalorder %s18, 3
      %p86 = por %p84, %p85
      %p87 = scmp.ne.s32.totalorder %s79, %s82
      %p88 = scmp.eq.s32.totalorder %s18, 0
      %p89 = por %p87, %p88
      %p90 = scmp.ne.s32.totalorder %s79, %s82
      %p91 = scmp.eq.s32.totalorder %s23, 3
      %p92 = por %p90, %p91
      %p93 = scmp.ne.s32.totalorder %s82, %s83
      %p94 = scmp.eq.s32.totalorder %s23, 0
      %p95 = por %p93, %p94
      %p96 = scmp.ne.s32.totalorder %s82, %s83
      %p97 = scmp.eq.s32.totalorder %s24, 3
      %p98 = por %p96, %p97
      %p100 = scmp.ne.s32.totalorder %s83, %s99
      %p101 = scmp.eq.s32.totalorder %s24, 0
      %p102 = por %p100, %p101
      %s103 = ssub.s32 %s25, %s44
      %s104 = ssub.s32 %s26, %s40
      %s105 = sor.u32 %s103, %s104
      %p106 = scmp.eq.s32.totalorder %s105, 0
      %s108 = sadd.s32 %s107, 1
      %s109 = scalar_select %p106, %s107, %s108
      %p112 = pneg %p106
      %p113 = scmp.eq.s32.totalorder %s18, 3
      %p114 = por %p112, %p113
      %p115 = scmp.ne.s32.totalorder %s107, %s110
      %p116 = scmp.eq.s32.totalorder %s18, 0
      %p117 = por %p115, %p116
      %p118 = scmp.ne.s32.totalorder %s107, %s110
      %p119 = scmp.eq.s32.totalorder %s23, 3
      %p120 = por %p118, %p119
      %p121 = scmp.ne.s32.totalorder %s110, %s111
      %p122 = scmp.eq.s32.totalorder %s23, 0
      %p123 = por %p121, %p122
      %p124 = scmp.ne.s32.totalorder %s110, %s111
      %p125 = scmp.eq.s32.totalorder %s24, 3
      %p126 = por %p124, %p125
      %p128 = scmp.ne.s32.totalorder %s111, %s127
      %p129 = scmp.eq.s32.totalorder %s24, 0
      %p130 = por %p128, %p129
      %s131 = ssub.s32 %s25, %s44
      %s132 = ssub.s32 %s26, %s40
      %s133 = sor.u32 %s131, %s132
      %p134 = scmp.eq.s32.totalorder %s133, 0
      %s136 = sadd.s32 %s135, 1
      %s137 = scalar_select %p134, %s135, %s136
      %p140 = pneg %p134
      %p141 = scmp.eq.s32.totalorder %s18, 3
      %p142 = por %p140, %p141
      %p143 = scmp.ne.s32.totalorder %s135, %s138
      %p144 = scmp.eq.s32.totalorder %s18, 0
      %p145 = por %p143, %p144
      %p146 = scmp.ne.s32.totalorder %s135, %s138
      %p147 = scmp.eq.s32.totalorder %s23, 3
      %p148 = por %p146, %p147
      %p149 = scmp.ne.s32.totalorder %s138, %s139
      %p150 = scmp.eq.s32.totalorder %s23, 0
      %p151 = por %p149, %p150
      %p152 = scmp.ne.s32.totalorder %s138, %s139
      %p153 = scmp.eq.s32.totalorder %s24, 3
      %p154 = por %p152, %p153
      %p156 = scmp.ne.s32.totalorder %s139, %s155
      %p157 = scmp.eq.s32.totalorder %s24, 0
      %p158 = por %p156, %p157
      %s159 = ssub.s32 %s27, %s36
      %s160 = ssub.s32 %s25, %s44
      %s161 = sor.u32 %s159, %s160
      %s162 = ssub.s32 %s26, %s40
      %s163 = sor.u32 %s161, %s162
      %p164 = scmp.eq.s32.totalorder %s163, 0
      %s166 = sadd.s32 %s165, 1
      %s167 = scalar_select %p164, %s165, %s166
      %p170 = pneg %p164
      %p171 = scmp.eq.s32.totalorder %s18, 3
      %p172 = por %p170, %p171
      %p173 = scmp.ne.s32.totalorder %s165, %s168
      %p174 = scmp.eq.s32.totalorder %s18, 0
      %p175 = por %p173, %p174
      %p176 = scmp.ne.s32.totalorder %s165, %s168
      %p177 = scmp.eq.s32.totalorder %s23, 3
      %p178 = por %p176, %p177
      %p179 = scmp.ne.s32.totalorder %s168, %s169
      %p180 = scmp.eq.s32.totalorder %s23, 0
      %p181 = por %p179, %p180
      %p182 = scmp.ne.s32.totalorder %s168, %s169
      %p183 = scmp.eq.s32.totalorder %s24, 3
      %p184 = por %p182, %p183
      %p186 = scmp.ne.s32.totalorder %s169, %s185
      %p187 = scmp.eq.s32.totalorder %s24, 0
      %p188 = por %p186, %p187
      %p189 = scmp.le.s32.totalorder 1, %s18
      %p190 = scmp.lt.s32.totalorder %s18, 5
      %p191 = pnand %p189, %p190
      %p192 = pneg %p191
      // Predicated region
      $region9: #{tpu_custom_call.1} parent=5 // pred_check
        _
      $region10: #{tpu_custom_call.1} parent=5 // pred_check_branch
        %194 = sbr.rel (%p191) target = $region12
      $region11: #{tpu_custom_call.1} parent=5 // pred_region
        %s195 = ssub.s32 %s18, 1
        // Predicated region
        $region13: #{tpu_custom_call.1} parent=11 // pred_check
          %p196 = pneg %p95
        $region14: #{tpu_custom_call.1} parent=11 // pred_check_branch
          %198 = sbr.rel (%p196) target = $region16
        $region15: #{tpu_custom_call.1} parent=11 // pred_region
          %s199 = smul.u32 2, %s28
          %s200 = smul.u32 2, %s29
          %s202 = ssub.s32 512, 512
          %203 = vsyncadd [#allocation6], %s202
          %s204 = smul.addr %s199, 2
          %s205 = sadd.s32 %s200, %s204
          %s206 = smul.addr %s205, 128
          %s207 = scalar_lea.hbm %s1, %s206
          %s208 = sshll.u32 [#allocation5], 4
          %s209 = int_to_ptr.vmem [resolvable:$true] %s208
          %214 = dma.hbm_to_vmem [thread:$0]  %s207, 512, %s209, [#allocation6], 256, 256, 16
        $region16: #{tpu_custom_call.1} parent=11 // pred_fallthru
          _
        // Predicated region
        $region17: #{tpu_custom_call.1} parent=11 // pred_check
          %p215 = pneg %p123
        $region18: #{tpu_custom_call.1} parent=11 // pred_check_branch
          %217 = sbr.rel (%p215) target = $region20
        $region19: #{tpu_custom_call.1} parent=11 // pred_region
          %s218 = smul.u32 2, %s28
          %s219 = smul.u32 2, %s29
          %s221 = ssub.s32 512, 512
          %222 = vsyncadd [#allocation6], %s221
          %s223 = smul.addr %s218, 2
          %s224 = sadd.s32 %s219, %s223
          %s225 = smul.addr %s224, 128
          %s226 = scalar_lea.hbm %s2, %s225
          %s227 = sshll.u32 [#allocation7], 4
          %s228 = int_to_ptr.vmem [resolvable:$true] %s227
          %233 = dma.hbm_to_vmem [thread:$0]  %s226, 512, %s228, [#allocation6], 256, 256, 16
        $region20: #{tpu_custom_call.1} parent=11 // pred_fallthru
          _
        // Predicated region
        $region21: #{tpu_custom_call.1} parent=11 // pred_check
          %p234 = pneg %p151
        $region22: #{tpu_custom_call.1} parent=11 // pred_check_branch
          %236 = sbr.rel (%p234) target = $region24
        $region23: #{tpu_custom_call.1} parent=11 // pred_region
          %s237 = smul.u32 2, %s28
          %s238 = smul.u32 2, %s29
          %s240 = ssub.s32 512, 512
          %241 = vsyncadd [#allocation9], %s240
          %s242 = smul.addr %s237, 2
          %s243 = sadd.s32 %s238, %s242
          %s244 = smul.addr %s243, 128
          %s245 = scalar_lea.hbm %s3, %s244
          %s246 = sshll.u32 [#allocation8], 4
          %s247 = int_to_ptr.vmem [resolvable:$true] %s246
          %252 = dma.hbm_to_vmem [thread:$0]  %s245, 512, %s247, [#allocation9], 256, 256, 16
        $region24: #{tpu_custom_call.1} parent=11 // pred_fallthru
          _
      $region12: #{tpu_custom_call.1} parent=5 // pred_fallthru
        _
      %p253 = scmp.lt.s32.totalorder %s18, 4
      // Predicated region
      $region25: #{tpu_custom_call.1} parent=5 // pred_check
        %p254 = pneg %p253
      $region26: #{tpu_custom_call.1} parent=5 // pred_check_branch
        %256 = sbr.rel (%p254) target = $region28
      $region27: #{tpu_custom_call.1} parent=5 // pred_region
        // Predicated region
        $region29: #{tpu_custom_call.1} parent=27 // pred_check
          %p257 = pneg %p61
        $region30: #{tpu_custom_call.1} parent=27 // pred_check_branch
          %259 = sbr.rel (%p257) target = $region32
        $region31: #{tpu_custom_call.1} parent=27 // pred_region
          %s260 = sand.u32 %s51, 1
          %s261 = scalar_lea.sflag [#allocation3], %s260
          %s262 = sand.u32 %s51, 1
          %s263 = smul.addr %s262, 32
          %s264 = scalar_lea.vmem [#allocation2], %s263
          %s265 = smul.u32 2, %s25
          %s266 = smul.u32 2, %s26
          %s268 = ssub.s32 512, 512
          %269 = vsyncadd %s261, %s268
          %s270 = smul.addr %s265, 2
          %s271 = sadd.s32 %s266, %s270
          %s272 = smul.addr %s27, 4
          %s273 = sadd.s32 %s271, %s272
          %s274 = smul.addr %s273, 128
          %s275 = scalar_lea.hbm %s0, %s274
          %s276 = sshll.u32 %s264, 4
          %s277 = int_to_ptr.vmem [resolvable:$true] %s276
          %282 = dma.hbm_to_vmem [thread:$0]  %s275, 512, %s277, %s261, 256, 256, 16
        $region32: #{tpu_custom_call.1} parent=27 // pred_fallthru
          _
      $region28: #{tpu_custom_call.1} parent=5 // pred_fallthru
        _
      %p283 = scmp.le.s32.totalorder 1, %s18
      %p284 = scmp.lt.s32.totalorder %s18, 5
      %p285 = pnand %p283, %p284
      %p286 = pneg %p285
      // Predicated region
      $region33: #{tpu_custom_call.1} parent=5 // pred_check
        _
      $region34: #{tpu_custom_call.1} parent=5 // pred_check_branch
        %288 = sbr.rel (%p285) target = $region36
      $region35: #{tpu_custom_call.1} parent=5 // pred_region
        %s289 = ssub.s32 %s18, 1
        %s290 = sand.u32 %s54, 1
        %s291 = scalar_lea.sflag [#allocation3], %s290
        %s292 = sand.u32 %s54, 1
        %s293 = smul.addr %s292, 32
        %s294 = scalar_lea.vmem [#allocation2], %s293
        // Predicated region
        $region37: #{tpu_custom_call.1} parent=35 // pred_check
          %p295 = pneg %p67
        $region38: #{tpu_custom_call.1} parent=35 // pred_check_branch
          %297 = sbr.rel (%p295) target = $region40
        $region39: #{tpu_custom_call.1} parent=35 // pred_region
          %298 = dma.done %s291, 512
        $region40: #{tpu_custom_call.1} parent=35 // pred_fallthru
          _
        // Predicated region
        $region41: #{tpu_custom_call.1} parent=35 // pred_check
          %p299 = pneg %p95
        $region42: #{tpu_custom_call.1} parent=35 // pred_check_branch
          %301 = sbr.rel (%p299) target = $region44
        $region43: #{tpu_custom_call.1} parent=35 // pred_region
          %302 = dma.done [#allocation6], 512
        $region44: #{tpu_custom_call.1} parent=35 // pred_fallthru
          _
        // Predicated region
        $region45: #{tpu_custom_call.1} parent=35 // pred_check
          %p303 = pneg %p123
        $region46: #{tpu_custom_call.1} parent=35 // pred_check_branch
          %305 = sbr.rel (%p303) target = $region48
        $region47: #{tpu_custom_call.1} parent=35 // pred_region
          %306 = dma.done [#allocation6], 512
        $region48: #{tpu_custom_call.1} parent=35 // pred_fallthru
          _
        // Predicated region
        $region49: #{tpu_custom_call.1} parent=35 // pred_check
          %p307 = pneg %p151
        $region50: #{tpu_custom_call.1} parent=35 // pred_check_branch
          %309 = sbr.rel (%p307) target = $region52
        $region51: #{tpu_custom_call.1} parent=35 // pred_region
          %310 = dma.done [#allocation9], 512
        $region52: #{tpu_custom_call.1} parent=35 // pred_fallthru
          _
        %s311 = sand.u32 %s54, 1
        %s312 = scalar_lea.sflag [#allocation3], %s311
        %s313 = sand.u32 %s54, 1
        %s314 = smul.addr %s313, 32
        %s315 = scalar_lea.vmem [#allocation2], %s314
        %p316 = pneg %p67
        %p317 = pneg %p64
        %p318 = pneg %p95
        %p319 = pneg %p92
        %p320 = pneg %p123
        %p321 = pneg %p120
        %p322 = pneg %p151
        %p323 = pneg %p148
        %p324 = pneg %p181
        %p325 = pneg %p178
        %s326 = sand.u32 %s168, 1
        %s327 = scalar_lea.sflag [#allocation4], %s326
        %s328 = sand.u32 %s168, 1
        %s329 = smul.addr %s328, 32
        %s330 = scalar_lea.vmem [#allocation10], %s329
        %s331 = smul.u32 2, %s28
        %s332 = smul.u32 2, %s29
        %s333 = smul.u32 2, %s28
        %s334 = smul.u32 2, %s29
        %s335 = smul.u32 2, %s28
        %s336 = smul.u32 2, %s29
        %s337 = smul.u32 2, %s28
        %s338 = smul.u32 2, %s29
        %s339 = smul.u32 2, %s28
        %s340 = smul.u32 2, %s29
        %v341 = vld [vmem:[%s294] sm:$0xff]
        %v342 = vld [vmem:[%s294 + $0x8] sm:$0xff]
        %v343 = vld [vmem:[%s294 + $0x10] sm:$0xff]
        %v344 = vld [vmem:[%s294 + $0x18] sm:$0xff]
        %v345 = vld [vmem:[#allocation5] sm:$0xff]
        %v346 = vld [vmem:[#allocation5 + $0x8] sm:$0xff]
        %v347 = vld [vmem:[#allocation5 + $0x10] sm:$0xff]
        %v348 = vld [vmem:[#allocation5 + $0x18] sm:$0xff]
        %v349 = vsub.f32 %v341, %v345
        %v350 = vsub.f32 %v342, %v346
        %v351 = vsub.f32 %v343, %v347
        %v352 = vsub.f32 %v344, %v348
        %v353 = vmul.f32 %v349, %v349
        %v354 = vmul.f32 %v350, %v350
        %v355 = vmul.f32 %v351, %v351
        %v356 = vmul.f32 %v352, %v352
        %v357 = vld [vmem:[#allocation7] sm:$0xff]
        %v358 = vld [vmem:[#allocation7 + $0x8] sm:$0xff]
        %v359 = vld [vmem:[#allocation7 + $0x10] sm:$0xff]
        %v360 = vld [vmem:[#allocation7 + $0x18] sm:$0xff]
        %v361 = vmul.f32 %v353, %v357
        %v362 = vmul.f32 %v354, %v358
        %v363 = vmul.f32 %v355, %v359
        %v364 = vmul.f32 %v356, %v360
        %v365 = vld [vmem:[#allocation8] sm:$0xff]
        %v366 = vld [vmem:[#allocation8 + $0x8] sm:$0xff]
        %v367 = vld [vmem:[#allocation8 + $0x10] sm:$0xff]
        %v368 = vld [vmem:[#allocation8 + $0x18] sm:$0xff]
        %v369 = vadd.f32 %v361, %v365
        %v370 = vadd.f32 %v362, %v366
        %v371 = vadd.f32 %v363, %v367
        %v372 = vadd.f32 %v364, %v368
        %373 = vst [vmem:[%s330] sm:$0xff] %v369
        %374 = vst [vmem:[%s330 + $0x8] sm:$0xff] %v370
        %375 = vst [vmem:[%s330 + $0x10] sm:$0xff] %v371
        %376 = vst [vmem:[%s330 + $0x18] sm:$0xff] %v372
        %s377 = sand.u32 %s168, 1
        %s378 = scalar_lea.sflag [#allocation4], %s377
        %s379 = sand.u32 %s168, 1
        %s380 = smul.addr %s379, 32
        %s381 = scalar_lea.vmem [#allocation10], %s380
        // Predicated region
        $region53: #{tpu_custom_call.1} parent=35 // pred_check
          %p382 = pneg %p178
        $region54: #{tpu_custom_call.1} parent=35 // pred_check_branch
          %384 = sbr.rel (%p382) target = $region56
        $region55: #{tpu_custom_call.1} parent=35 // pred_region
          %s385 = smul.u32 2, %s28
          %s386 = smul.u32 2, %s29
          %s388 = ssub.s32 512, 512
          %389 = vsyncadd %s378, %s388
          %s390 = smul.addr %s385, 2
          %s391 = sadd.s32 %s386, %s390
          %s392 = smul.addr %s30, 4
          %s393 = sadd.s32 %s391, %s392
          %s394 = smul.addr %s393, 128
          %s395 = scalar_lea.hbm %s4, %s394
          %s396 = sshll.u32 %s381, 4
          %s397 = int_to_ptr.vmem [resolvable:$true] %s396
          %402 = dma.vmem_to_hbm [thread:$0]  %s397, 512, %s395, %s378, 256, 256, 16
        $region56: #{tpu_custom_call.1} parent=35 // pred_fallthru
          _
      $region36: #{tpu_custom_call.1} parent=5 // pred_fallthru
        _
      %p403 = scmp.le.s32.totalorder 2, %s18
      // Predicated region
      $region57: #{tpu_custom_call.1} parent=5 // pred_check
        %p404 = pneg %p403
      $region58: #{tpu_custom_call.1} parent=5 // pred_check_branch
        %406 = sbr.rel (%p404) target = $region60
      $region59: #{tpu_custom_call.1} parent=5 // pred_region
        %s407 = ssub.s32 %s18, 2
        // Predicated region
        $region61: #{tpu_custom_call.1} parent=59 // pred_check
          %p408 = pneg %p184
        $region62: #{tpu_custom_call.1} parent=59 // pred_check_branch
          %410 = sbr.rel (%p408) target = $region64
        $region63: #{tpu_custom_call.1} parent=59 // pred_region
          %s411 = sand.u32 %s169, 1
          %s412 = scalar_lea.sflag [#allocation4], %s411
          %s413 = sand.u32 %s169, 1
          %s414 = smul.addr %s413, 32
          %s415 = scalar_lea.vmem [#allocation10], %s414
          %416 = dma.done %s412, 512
        $region64: #{tpu_custom_call.1} parent=59 // pred_fallthru
          _
      $region60: #{tpu_custom_call.1} parent=5 // pred_fallthru
        _
    $region6: #{tpu_custom_call.1} parent=1 // loop_footer
      %s22 = sadd.s32 1, %s18
    $region7: #{tpu_custom_call.1} parent=1 // loop_footer_branch
      %17 = sbr.rel target = $region3
    $region8: #{tpu_custom_call.1} parent=1 // loop_exit
      _
    %417 = vsyncpa [#allocation3], 1
    %s418 = scalar_lea.sflag [#allocation3], 1
    %419 = vsyncpa %s418, 1
    %420 = vsyncpa [#allocation6], 1
    %421 = vsyncpa [#allocation9], 1
    %422 = vsyncpa [#allocation4], 1
    %s423 = scalar_lea.sflag [#allocation4], 1
    %424 = vsyncpa %s423, 1

// kernel: tpu_custom_call.1
$region0: #{tpu_custom_call.1}
  #allocation0 [shape = 'u32[]', space=smem, size = 0x4, offset = 0x4, fixed_abs, tag = 'smem constant byte address 0x4 - core index']
  #allocation1 [shape = 'u32[144,128]{1,0:T(1,128)}', space=vmem, size = 0x12000, scoped, tag = 'internal scratch']
  %s0 = inlined_call_operand.hbm [shape: f32[4,16,256], index: 0, kind: input, shape index: {}]
  %s1 = inlined_call_operand.hbm [shape: f32[16,256], index: 1, kind: input, shape index: {}]
  %s2 = inlined_call_operand.hbm [shape: f32[16,256], index: 2, kind: input, shape index: {}]
  %s3 = inlined_call_operand.hbm [shape: f32[16,256], index: 3, kind: input, shape index: {}]
  %s4 = inlined_call_operand.hbm [shape: f32[4,16,256], index: 4, kind: output, shape index: {}]
  %s5 = sld [smem:[#allocation0]]
  $region65: #{tpu_custom_call.1} parent=0
    _
  %s7 = ssub.s32 1, %s5
  %s8 = scalar_select 0, %s7, %s5
  $region1: #{tpu_custom_call.1} parent=0
    #allocation2 [shape = 'u8[32768]{0}', space=vmem, size = 0x8000, scoped, tag = 'input window, operand 0']
    #allocation3 [shape = 's32[2]{0}', space=sflag, size = 0x8, scoped, tag = 'scoped memory for tpu_custom_call.1']
    #allocation4 [shape = 's32[2]{0}', space=sflag, size = 0x8, scoped, tag = 'scoped memory for tpu_custom_call.1']
    #allocation5 [shape = 'u8[16384]{0}', space=vmem, size = 0x4000, scoped, tag = 'input window, operand 1, single buffered']
    #allocation6 [shape = 's32[1]{0}', space=sflag, size = 0x4, scoped, tag = 'scoped memory for tpu_custom_call.1']
    #allocation7 [shape = 'u8[16384]{0}', space=vmem, size = 0x4000, scoped, tag = 'input window, operand 2, single buffered']
    #allocation8 [shape = 'u8[16384]{0}', space=vmem, size = 0x4000, scoped, tag = 'input window, operand 3, single buffered']
    #allocation9 [shape = 's32[1]{0}', space=sflag, size = 0x4, scoped, tag = 'scoped memory for tpu_custom_call.1']
    #allocation10 [shape = 'u8[32768]{0}', space=vmem, size = 0x8000, scoped, tag = 'output window, operand 0']
    %9 = vsyncpa [#allocation3], 0
    %s10 = scalar_lea.sflag [#allocation3], 1
    %11 = vsyncpa %s10, 0
    %12 = vsyncpa [#allocation6], 0
    %13 = vsyncpa [#allocation9], 0
    %14 = vsyncpa [#allocation4], 0
    %s15 = scalar_lea.sflag [#allocation4], 1
    %16 = vsyncpa %s15, 0
    loop: start=0, step=1, limit=6
    $region2: #{tpu_custom_call.1} parent=1 // loop_pre_header
      _
    $region3: #{tpu_custom_call.1} parent=1 // loop_header
      %s18 = sphi 0, %s22
      %p19 = scmp.ge.s32.totalorder %s18, 6
      %s25 = sphi 0, %s44
      %s26 = sphi 0, %s40
      %s27 = sphi 0, %s36
      %s28 = sphi 0, %s25
      %s29 = sphi 0, %s26
      %s30 = sphi 0, %s27
      %s31 = sphi 0, %s28
      %s32 = sphi 0, %s29
      %s33 = sphi 0, %s30
      %s51 = sphi 0, %s53
      %s54 = sphi 0, %s51
      %s55 = sphi 0, %s54
      %s71 = sphi 0, %s55
      %s79 = sphi 0, %s81
      %s82 = sphi 0, %s79
      %s83 = sphi 0, %s82
      %s99 = sphi 0, %s83
      %s107 = sphi 0, %s109
      %s110 = sphi 0, %s107
      %s111 = sphi 0, %s110
      %s127 = sphi 0, %s111
      %s135 = sphi 0, %s137
      %s138 = sphi 0, %s135
      %s139 = sphi 0, %s138
      %s155 = sphi 0, %s139
      %s165 = sphi 0, %s167
      %s168 = sphi 0, %s165
      %s169 = sphi 0, %s168
      %s185 = sphi 0, %s169
    $region4: #{tpu_custom_call.1} parent=1 // loop_header_branch
      %21 = sbr.rel (%p19) target = $region8
    $region5: #{tpu_custom_call.1} parent=1 // loop_body
      %s23 = ssub.s32 %s18, 1
      %s24 = ssub.s32 %s18, 2
      %s34 = sadd.s32 1, %s27
      %p35 = scmp.ge.s32.totalorder %s34, 4
      %s36 = scalar_select %p35, 0, %s34
      %s37 = sadd.s32 1, %s26
      %s38 = scalar_select %p35, %s37, %s26
      %p39 = scmp.ge.s32.totalorder %s38, 1
      %s40 = scalar_select %p39, 0, %s38
      %s41 = sadd.s32 1, %s25
      %s42 = scalar_select %p39, %s41, %s25
      %p43 = scmp.ge.s32.totalorder %s42, 1
      %s44 = scalar_select %p43, 0, %s42
      %s45 = ssub.s32 %s27, %s36
      %s46 = ssub.s32 %s25, %s44
      %s47 = sor.u32 %s45, %s46
      %s48 = ssub.s32 %s26, %s40
      %s49 = sor.u32 %s47, %s48
      %p50 = scmp.eq.s32.totalorder %s49, 0
      %s52 = sadd.s32 %s51, 1
      %s53 = scalar_select %p50, %s51, %s52
      %p56 = pneg %p50
      %p57 = scmp.eq.s32.totalorder %s18, 3
      %p58 = por %p56, %p57
      %p59 = scmp.ne.s32.totalorder %s51, %s54
      %p60 = scmp.eq.s32.totalorder %s18, 0
      %p61 = por %p59, %p60
      %p62 = scmp.ne.s32.totalorder %s51, %s54
      %p63 = scmp.eq.s32.totalorder %s23, 3
      %p64 = por %p62, %p63
      %p65 = scmp.ne.s32.totalorder %s54, %s55
      %p66 = scmp.eq.s32.totalorder %s23, 0
      %p67 = por %p65, %p66
      %p68 = scmp.ne.s32.totalorder %s54, %s55
      %p69 = scmp.eq.s32.totalorder %s24, 3
      %p70 = por %p68, %p69
      %p72 = scmp.ne.s32.totalorder %s55, %s71
      %p73 = scmp.eq.s32.totalorder %s24, 0
      %p74 = por %p72, %p73
      %s75 = ssub.s32 %s25, %s44
      %s76 = ssub.s32 %s26, %s40
      %s77 = sor.u32 %s75, %s76
      %p78 = scmp.eq.s32.totalorder %s77, 0
      %s80 = sadd.s32 %s79, 1
      %s81 = scalar_select %p78, %s79, %s80
      %p84 = pneg %p78
      %p85 = scmp.eq.s32.totalorder %s18, 3
      %p86 = por %p84, %p85
      %p87 = scmp.ne.s32.totalorder %s79, %s82
      %p88 = scmp.eq.s32.totalorder %s18, 0
      %p89 = por %p87, %p88
      %p90 = scmp.ne.s32.totalorder %s79, %s82
      %p91 = scmp.eq.s32.totalorder %s23, 3
      %p92 = por %p90, %p91
      %p93 = scmp.ne.s32.totalorder %s82, %s83
      %p94 = scmp.eq.s32.totalorder %s23, 0
      %p95 = por %p93, %p94
      %p96 = scmp.ne.s32.totalorder %s82, %s83
      %p97 = scmp.eq.s32.totalorder %s24, 3
      %p98 = por %p96, %p97
      %p100 = scmp.ne.s32.totalorder %s83, %s99
      %p101 = scmp.eq.s32.totalorder %s24, 0
      %p102 = por %p100, %p101
      %s103 = ssub.s32 %s25, %s44
      %s104 = ssub.s32 %s26, %s40
      %s105 = sor.u32 %s103, %s104
      %p106 = scmp.eq.s32.totalorder %s105, 0
      %s108 = sadd.s32 %s107, 1
      %s109 = scalar_select %p106, %s107, %s108
      %p112 = pneg %p106
      %p113 = scmp.eq.s32.totalorder %s18, 3
      %p114 = por %p112, %p113
      %p115 = scmp.ne.s32.totalorder %s107, %s110
      %p116 = scmp.eq.s32.totalorder %s18, 0
      %p117 = por %p115, %p116
      %p118 = scmp.ne.s32.totalorder %s107, %s110
      %p119 = scmp.eq.s32.totalorder %s23, 3
      %p120 = por %p118, %p119
      %p121 = scmp.ne.s32.totalorder %s110, %s111
      %p122 = scmp.eq.s32.totalorder %s23, 0
      %p123 = por %p121, %p122
      %p124 = scmp.ne.s32.totalorder %s110, %s111
      %p125 = scmp.eq.s32.totalorder %s24, 3
      %p126 = por %p124, %p125
      %p128 = scmp.ne.s32.totalorder %s111, %s127
      %p129 = scmp.eq.s32.totalorder %s24, 0
      %p130 = por %p128, %p129
      %s131 = ssub.s32 %s25, %s44
      %s132 = ssub.s32 %s26, %s40
      %s133 = sor.u32 %s131, %s132
      %p134 = scmp.eq.s32.totalorder %s133, 0
      %s136 = sadd.s32 %s135, 1
      %s137 = scalar_select %p134, %s135, %s136
      %p140 = pneg %p134
      %p141 = scmp.eq.s32.totalorder %s18, 3
      %p142 = por %p140, %p141
      %p143 = scmp.ne.s32.totalorder %s135, %s138
      %p144 = scmp.eq.s32.totalorder %s18, 0
      %p145 = por %p143, %p144
      %p146 = scmp.ne.s32.totalorder %s135, %s138
      %p147 = scmp.eq.s32.totalorder %s23, 3
      %p148 = por %p146, %p147
      %p149 = scmp.ne.s32.totalorder %s138, %s139
      %p150 = scmp.eq.s32.totalorder %s23, 0
      %p151 = por %p149, %p150
      %p152 = scmp.ne.s32.totalorder %s138, %s139
      %p153 = scmp.eq.s32.totalorder %s24, 3
      %p154 = por %p152, %p153
      %p156 = scmp.ne.s32.totalorder %s139, %s155
      %p157 = scmp.eq.s32.totalorder %s24, 0
      %p158 = por %p156, %p157
      %s159 = ssub.s32 %s27, %s36
      %s160 = ssub.s32 %s25, %s44
      %s161 = sor.u32 %s159, %s160
      %s162 = ssub.s32 %s26, %s40
      %s163 = sor.u32 %s161, %s162
      %p164 = scmp.eq.s32.totalorder %s163, 0
      %s166 = sadd.s32 %s165, 1
      %s167 = scalar_select %p164, %s165, %s166
      %p170 = pneg %p164
      %p171 = scmp.eq.s32.totalorder %s18, 3
      %p172 = por %p170, %p171
      %p173 = scmp.ne.s32.totalorder %s165, %s168
      %p174 = scmp.eq.s32.totalorder %s18, 0
      %p175 = por %p173, %p174
      %p176 = scmp.ne.s32.totalorder %s165, %s168
      %p177 = scmp.eq.s32.totalorder %s23, 3
      %p178 = por %p176, %p177
      %p179 = scmp.ne.s32.totalorder %s168, %s169
      %p180 = scmp.eq.s32.totalorder %s23, 0
      %p181 = por %p179, %p180
      %p182 = scmp.ne.s32.totalorder %s168, %s169
      %p183 = scmp.eq.s32.totalorder %s24, 3
      %p184 = por %p182, %p183
      %p186 = scmp.ne.s32.totalorder %s169, %s185
      %p187 = scmp.eq.s32.totalorder %s24, 0
      %p188 = por %p186, %p187
      %p189 = scmp.le.s32.totalorder 1, %s18
      %p190 = scmp.lt.s32.totalorder %s18, 5
      %p191 = pnand %p189, %p190
      %p192 = pneg %p191
      // Predicated region
      $region9: #{tpu_custom_call.1} parent=5 // pred_check
        _
      $region10: #{tpu_custom_call.1} parent=5 // pred_check_branch
        %194 = sbr.rel (%p191) target = $region12
      $region11: #{tpu_custom_call.1} parent=5 // pred_region
        %s195 = ssub.s32 %s18, 1
        // Predicated region
        $region13: #{tpu_custom_call.1} parent=11 // pred_check
          %p196 = pneg %p95
        $region14: #{tpu_custom_call.1} parent=11 // pred_check_branch
          %198 = sbr.rel (%p196) target = $region16
        $region15: #{tpu_custom_call.1} parent=11 // pred_region
          %s199 = smul.u32 2, %s28
          %s200 = smul.u32 2, %s29
          %s202 = ssub.s32 512, 512
          %203 = vsyncadd [#allocation6], %s202
          %s204 = smul.addr %s199, 2
          %s205 = sadd.s32 %s200, %s204
          %s206 = smul.addr %s205, 128
          %s207 = scalar_lea.hbm %s1, %s206
          %s208 = sshll.u32 [#allocation5], 4
          %s209 = int_to_ptr.vmem [resolvable:$true] %s208
          %214 = dma.hbm_to_vmem [thread:$0]  %s207, 512, %s209, [#allocation6], 256, 256, 16
        $region16: #{tpu_custom_call.1} parent=11 // pred_fallthru
          _
        // Predicated region
        $region17: #{tpu_custom_call.1} parent=11 // pred_check
          %p215 = pneg %p123
        $region18: #{tpu_custom_call.1} parent=11 // pred_check_branch
          %217 = sbr.rel (%p215) target = $region20
        $region19: #{tpu_custom_call.1} parent=11 // pred_region
          %s218 = smul.u32 2, %s28
          %s219 = smul.u32 2, %s29
          %s221 = ssub.s32 512, 512
          %222 = vsyncadd [#allocation6], %s221
          %s223 = smul.addr %s218, 2
          %s224 = sadd.s32 %s219, %s223
          %s225 = smul.addr %s224, 128
          %s226 = scalar_lea.hbm %s2, %s225
          %s227 = sshll.u32 [#allocation7], 4
          %s228 = int_to_ptr.vmem [resolvable:$true] %s227
          %233 = dma.hbm_to_vmem [thread:$0]  %s226, 512, %s228, [#allocation6], 256, 256, 16
        $region20: #{tpu_custom_call.1} parent=11 // pred_fallthru
          _
        // Predicated region
        $region21: #{tpu_custom_call.1} parent=11 // pred_check
          %p234 = pneg %p151
        $region22: #{tpu_custom_call.1} parent=11 // pred_check_branch
          %236 = sbr.rel (%p234) target = $region24
        $region23: #{tpu_custom_call.1} parent=11 // pred_region
          %s237 = smul.u32 2, %s28
          %s238 = smul.u32 2, %s29
          %s240 = ssub.s32 512, 512
          %241 = vsyncadd [#allocation9], %s240
          %s242 = smul.addr %s237, 2
          %s243 = sadd.s32 %s238, %s242
          %s244 = smul.addr %s243, 128
          %s245 = scalar_lea.hbm %s3, %s244
          %s246 = sshll.u32 [#allocation8], 4
          %s247 = int_to_ptr.vmem [resolvable:$true] %s246
          %252 = dma.hbm_to_vmem [thread:$0]  %s245, 512, %s247, [#allocation9], 256, 256, 16
        $region24: #{tpu_custom_call.1} parent=11 // pred_fallthru
          _
      $region12: #{tpu_custom_call.1} parent=5 // pred_fallthru
        _
      %p253 = scmp.lt.s32.totalorder %s18, 4
      // Predicated region
      $region25: #{tpu_custom_call.1} parent=5 // pred_check
        %p254 = pneg %p253
      $region26: #{tpu_custom_call.1} parent=5 // pred_check_branch
        %256 = sbr.rel (%p254) target = $region28
      $region27: #{tpu_custom_call.1} parent=5 // pred_region
        // Predicated region
        $region29: #{tpu_custom_call.1} parent=27 // pred_check
          %p257 = pneg %p61
        $region30: #{tpu_custom_call.1} parent=27 // pred_check_branch
          %259 = sbr.rel (%p257) target = $region32
        $region31: #{tpu_custom_call.1} parent=27 // pred_region
          %s260 = sand.u32 %s51, 1
          %s261 = scalar_lea.sflag [#allocation3], %s260
          %s262 = sand.u32 %s51, 1
          %s263 = smul.addr %s262, 32
          %s264 = scalar_lea.vmem [#allocation2], %s263
          %s265 = smul.u32 2, %s25
          %s266 = smul.u32 2, %s26
          %s268 = ssub.s32 512, 512
          %269 = vsyncadd %s261, %s268
          %s270 = smul.addr %s265, 2
          %s271 = sadd.s32 %s266, %s270
          %s272 = smul.addr %s27, 4
          %s273 = sadd.s32 %s271, %s272
          %s274 = smul.addr %s273, 128
          %s275 = scalar_lea.hbm %s0, %s274
          %s276 = sshll.u32 %s264, 4
          %s277 = int_to_ptr.vmem [resolvable:$true] %s276
          %282 = dma.hbm_to_vmem [thread:$0]  %s275, 512, %s277, %s261, 256, 256, 16
        $region32: #{tpu_custom_call.1} parent=27 // pred_fallthru
          _
      $region28: #{tpu_custom_call.1} parent=5 // pred_fallthru
        _
      %p283 = scmp.le.s32.totalorder 1, %s18
      %p284 = scmp.lt.s32.totalorder %s18, 5
      %p285 = pnand %p283, %p284
      %p286 = pneg %p285
      // Predicated region
      $region33: #{tpu_custom_call.1} parent=5 // pred_check
        _
      $region34: #{tpu_custom_call.1} parent=5 // pred_check_branch
        %288 = sbr.rel (%p285) target = $region36
      $region35: #{tpu_custom_call.1} parent=5 // pred_region
        %s289 = ssub.s32 %s18, 1
        %s290 = sand.u32 %s54, 1
        %s291 = scalar_lea.sflag [#allocation3], %s290
        %s292 = sand.u32 %s54, 1
        %s293 = smul.addr %s292, 32
        %s294 = scalar_lea.vmem [#allocation2], %s293
        // Predicated region
        $region37: #{tpu_custom_call.1} parent=35 // pred_check
          %p295 = pneg %p67
        $region38: #{tpu_custom_call.1} parent=35 // pred_check_branch
          %297 = sbr.rel (%p295) target = $region40
        $region39: #{tpu_custom_call.1} parent=35 // pred_region
          %298 = dma.done %s291, 512
        $region40: #{tpu_custom_call.1} parent=35 // pred_fallthru
          _
        // Predicated region
        $region41: #{tpu_custom_call.1} parent=35 // pred_check
          %p299 = pneg %p95
        $region42: #{tpu_custom_call.1} parent=35 // pred_check_branch
          %301 = sbr.rel (%p299) target = $region44
        $region43: #{tpu_custom_call.1} parent=35 // pred_region
          %302 = dma.done [#allocation6], 512
        $region44: #{tpu_custom_call.1} parent=35 // pred_fallthru
          _
        // Predicated region
        $region45: #{tpu_custom_call.1} parent=35 // pred_check
          %p303 = pneg %p123
        $region46: #{tpu_custom_call.1} parent=35 // pred_check_branch
          %305 = sbr.rel (%p303) target = $region48
        $region47: #{tpu_custom_call.1} parent=35 // pred_region
          %306 = dma.done [#allocation6], 512
        $region48: #{tpu_custom_call.1} parent=35 // pred_fallthru
          _
        // Predicated region
        $region49: #{tpu_custom_call.1} parent=35 // pred_check
          %p307 = pneg %p151
        $region50: #{tpu_custom_call.1} parent=35 // pred_check_branch
          %309 = sbr.rel (%p307) target = $region52
        $region51: #{tpu_custom_call.1} parent=35 // pred_region
          %310 = dma.done [#allocation9], 512
        $region52: #{tpu_custom_call.1} parent=35 // pred_fallthru
          _
        %s311 = sand.u32 %s54, 1
        %s312 = scalar_lea.sflag [#allocation3], %s311
        %s313 = sand.u32 %s54, 1
        %s314 = smul.addr %s313, 32
        %s315 = scalar_lea.vmem [#allocation2], %s314
        %p316 = pneg %p67
        %p317 = pneg %p64
        %p318 = pneg %p95
        %p319 = pneg %p92
        %p320 = pneg %p123
        %p321 = pneg %p120
        %p322 = pneg %p151
        %p323 = pneg %p148
        %p324 = pneg %p181
        %p325 = pneg %p178
        %s326 = sand.u32 %s168, 1
        %s327 = scalar_lea.sflag [#allocation4], %s326
        %s328 = sand.u32 %s168, 1
        %s329 = smul.addr %s328, 32
        %s330 = scalar_lea.vmem [#allocation10], %s329
        %s331 = smul.u32 2, %s28
        %s332 = smul.u32 2, %s29
        %s333 = smul.u32 2, %s28
        %s334 = smul.u32 2, %s29
        %s335 = smul.u32 2, %s28
        %s336 = smul.u32 2, %s29
        %s337 = smul.u32 2, %s28
        %s338 = smul.u32 2, %s29
        %s339 = smul.u32 2, %s28
        %s340 = smul.u32 2, %s29
        %v341 = vld [vmem:[%s294] sm:$0xff]
        %v342 = vld [vmem:[%s294 + $0x8] sm:$0xff]
        %v343 = vld [vmem:[%s294 + $0x10] sm:$0xff]
        %v344 = vld [vmem:[%s294 + $0x18] sm:$0xff]
        %v345 = vld [vmem:[#allocation5] sm:$0xff]
        %v346 = vld [vmem:[#allocation5 + $0x8] sm:$0xff]
        %v347 = vld [vmem:[#allocation5 + $0x10] sm:$0xff]
        %v348 = vld [vmem:[#allocation5 + $0x18] sm:$0xff]
        %v349 = vsub.f32 %v341, %v345
        %v350 = vsub.f32 %v342, %v346
        %v351 = vsub.f32 %v343, %v347
        %v352 = vsub.f32 %v344, %v348
        %v353 = vmul.f32 %v349, %v349
        %v354 = vmul.f32 %v350, %v350
        %v355 = vmul.f32 %v351, %v351
        %v356 = vmul.f32 %v352, %v352
        %v357 = vld [vmem:[#allocation7] sm:$0xff]
        %v358 = vld [vmem:[#allocation7 + $0x8] sm:$0xff]
        %v359 = vld [vmem:[#allocation7 + $0x10] sm:$0xff]
        %v360 = vld [vmem:[#allocation7 + $0x18] sm:$0xff]
        %v361 = vmul.f32 %v353, %v357
        %v362 = vmul.f32 %v354, %v358
        %v363 = vmul.f32 %v355, %v359
        %v364 = vmul.f32 %v356, %v360
        %v365 = vld [vmem:[#allocation8] sm:$0xff]
        %v366 = vld [vmem:[#allocation8 + $0x8] sm:$0xff]
        %v367 = vld [vmem:[#allocation8 + $0x10] sm:$0xff]
        %v368 = vld [vmem:[#allocation8 + $0x18] sm:$0xff]
        %v369 = vadd.f32 %v361, %v365
        %v370 = vadd.f32 %v362, %v366
        %v371 = vadd.f32 %v363, %v367
        %v372 = vadd.f32 %v364, %v368
        %373 = vst [vmem:[%s330] sm:$0xff] %v369
        %374 = vst [vmem:[%s330 + $0x8] sm:$0xff] %v370
        %375 = vst [vmem:[%s330 + $0x10] sm:$0xff] %v371
        %376 = vst [vmem:[%s330 + $0x18] sm:$0xff] %v372
        %s377 = sand.u32 %s168, 1
        %s378 = scalar_lea.sflag [#allocation4], %s377
        %s379 = sand.u32 %s168, 1
        %s380 = smul.addr %s379, 32
        %s381 = scalar_lea.vmem [#allocation10], %s380
        // Predicated region
        $region53: #{tpu_custom_call.1} parent=35 // pred_check
          %p382 = pneg %p178
        $region54: #{tpu_custom_call.1} parent=35 // pred_check_branch
          %384 = sbr.rel (%p382) target = $region56
        $region55: #{tpu_custom_call.1} parent=35 // pred_region
          %s385 = smul.u32 2, %s28
          %s386 = smul.u32 2, %s29
          %s388 = ssub.s32 512, 512
          %389 = vsyncadd %s378, %s388
          %s390 = smul.addr %s385, 2
          %s391 = sadd.s32 %s386, %s390
          %s392 = smul.addr %s30, 4
          %s393 = sadd.s32 %s391, %s392
          %s394 = smul.addr %s393, 128
          %s395 = scalar_lea.hbm %s4, %s394
          %s396 = sshll.u32 %s381, 4
          %s397 = int_to_ptr.vmem [resolvable:$true] %s396
          %402 = dma.vmem_to_hbm [thread:$0]  %s397, 512, %s395, %s378, 256, 256, 16
        $region56: #{tpu_custom_call.1} parent=35 // pred_fallthru
          _
      $region36: #{tpu_custom_call.1} parent=5 // pred_fallthru
        _
      %p403 = scmp.le.s32.totalorder 2, %s18
      // Predicated region
      $region57: #{tpu_custom_call.1} parent=5 // pred_check
        %p404 = pneg %p403
      $region58: #{tpu_custom_call.1} parent=5 // pred_check_branch
        %406 = sbr.rel (%p404) target = $region60
      $region59: #{tpu_custom_call.1} parent=5 // pred_region
        %s407 = ssub.s32 %s18, 2
        // Predicated region
        $region61: #{tpu_custom_call.1} parent=59 // pred_check
          %p408 = pneg %p184
        $region62: #{tpu_custom_call.1} parent=59 // pred_check_branch
          %410 = sbr.rel (%p408) target = $region64
        $region63: #{tpu_custom_call.1} parent=59 // pred_region
          %s411 = sand.u32 %s169, 1
          %s412 = scalar_lea.sflag [#allocation4], %s411
          %s413 = sand.u32 %s169, 1
          %s414 = smul.addr %s413, 32
          %s415 = scalar_lea.vmem [#allocation10], %s414
          %416 = dma.done %s412, 512
        $region64: #{tpu_custom_call.1} parent=59 // pred_fallthru
          _
      $region60: #{tpu_custom_call.1} parent=5 // pred_fallthru
        _
    $region6: #{tpu_custom_call.1} parent=1 // loop_footer
      %s22 = sadd.s32 1, %s18
    $region7: #{tpu_custom_call.1} parent=1 // loop_footer_branch
      %17 = sbr.rel target = $region3
    $region8: #{tpu_custom_call.1} parent=1 // loop_exit
      _
    %417 = vsyncpa [#allocation3], 1
    %s418 = scalar_lea.sflag [#allocation3], 1
    %419 = vsyncpa %s418, 1
    %420 = vsyncpa [#allocation6], 1
    %421 = vsyncpa [#allocation9], 1
    %422 = vsyncpa [#allocation4], 1
    %s423 = scalar_lea.sflag [#allocation4], 1
    %424 = vsyncpa %s423, 1

</llo_original>
